<compile_context>
chip_gen: v7x
topology: tpu7x:2x2x1
jax: 0.10.0
libtpu: 0.0.40
codegen_flags: <defaults>
</compile_context>

<pallas_src>
import functools

import jax
import jax.numpy as jnp
from jax.experimental import pallas as pl
from jax.experimental.pallas import tpu as pltpu


# ---------------------------------------------------------------------------
# In-kernel helpers
# ---------------------------------------------------------------------------
def _lane_partial_sums(x, out_lanes=128):
    """(rows, cols) -> (rows, out_lanes) whose per-row lane-sum equals the row sum.

    Uses lane-aligned VALU adds when cols is a multiple of 128 (keeps the XLU /
    vector-extended slots free for MXU pushes); falls back to a single
    cross-lane reduce placed in lane 0 for awkward widths.
    """
    rows, cols = x.shape
    if cols % out_lanes == 0 and cols >= out_lanes:
        acc = x[:, 0:out_lanes]
        for j in range(1, cols // out_lanes):
            acc = acc + x[:, j * out_lanes:(j + 1) * out_lanes]
        return acc
    s = jnp.sum(x, axis=-1, keepdims=True)                       # (rows, 1)
    lane = jax.lax.broadcasted_iota(jnp.int32, (rows, out_lanes), 1)
    return jnp.where(lane == 0, s, jnp.zeros_like(s))


# ---------------------------------------------------------------------------
# Kernel
# ---------------------------------------------------------------------------
def _sae_kernel(a_ref, w_enc_ref, b_enc_ref, w_dec_ref, b_dec_ref,   # inputs
                xrec_ref, acts_ref, l2_ref, l1_ref,                  # outputs
                xcent_ref, l1_acc_ref, *rest,                        # scratch
                acc_in_out):
    # When the output dtype is f32 the x_reconstruct output block doubles as
    # the f32 accumulator (its block index is constant over h, so it stays
    # VMEM-resident); otherwise a dedicated f32 scratch is used.
    acc_ref = xrec_ref if acc_in_out else rest[0]

    h = pl.program_id(1)
    nh = pl.num_programs(1)

    b_dec = b_dec_ref[...]                                       # (1, d_act)

    @pl.when(h == 0)
    def _init():
        # Hoisted centering: one VALU pass per batch tile, reused for all h.
        xcent_ref[...] = (a_ref[...] - b_dec).astype(xcent_ref.dtype)
        acc_ref[...] = jnp.zeros_like(acc_ref)
        l1_acc_ref[...] = jnp.zeros_like(l1_acc_ref)

    # Encoder tile: relu(x_cent @ W_enc[:, h] + b_enc[h]).
    # MXU operands stay in their native dtype; accumulation is f32.
    pre = jnp.dot(xcent_ref[...], w_enc_ref[...],
                  preferred_element_type=jnp.float32)
    pre = pre + b_enc_ref[...].astype(jnp.float32)
    acts = jnp.maximum(pre, 0.0).astype(acts_ref.dtype)          # single downcast
    acts_ref[...] = acts

    # Decoder partial: acts[:, h] @ W_dec[h, :], accumulated in f32.
    dec = jnp.dot(acts, w_dec_ref[...], preferred_element_type=jnp.float32)
    acc_ref[...] += dec.astype(acc_ref.dtype)

    # L1 partial sums (ReLU output is non-negative: no abs needed),
    # lane-aligned so the inner loop stays pure VALU work.
    l1_acc_ref[...] += _lane_partial_sums(acts.astype(jnp.float32))

    @pl.when(h == nh - 1)
    def _finalize():
        a32 = a_ref[...].astype(jnp.float32)
        if acc_in_out:
            xrec_ref[...] = xrec_ref[...] + b_dec.astype(xrec_ref.dtype)
            x_rec32 = xrec_ref[...]
        else:
            x_rec = (acc_ref[...] + b_dec.astype(jnp.float32)).astype(xrec_ref.dtype)
            xrec_ref[...] = x_rec
            # Match the reference: l2 is computed from the stored-dtype x_rec.
            x_rec32 = x_rec.astype(jnp.float32)
        diff = x_rec32 - a32
        l2_ref[...] = _lane_partial_sums(diff * diff)
        l1_ref[...] = l1_acc_ref[...]


# ---------------------------------------------------------------------------
# Hardware queries & tiling helpers
# ---------------------------------------------------------------------------
def _round_up(x, m):
    return ((x + m - 1) // m) * m


def _tpu_vmem_capacity_bytes():
    try:
        return int(pltpu.get_tpu_info().vmem_capacity_bytes)
    except Exception:
        return 64 << 20       # conservative: fits every TPU generation


def _prefer_two_batch_tiles():
    # v7x has 2 TensorCores/chip; keep >=2 batch tiles so the "parallel" grid
    # axis can shard across them.  v5e / v6e are single-TC: no split needed.
    try:
        return "v7" in jax.devices()[0].device_kind.lower()
    except Exception:
        return False


def _vmem_estimate(tm, th, d_act, a_isz, w_isz, out_isz, acc_in_out):
    n = 0
    n += 2 * tm * d_act * a_isz            # A tile (double buffered)
    n += 2 * d_act * th * w_isz            # W_enc tile
    n += 2 * th * w_isz                    # b_enc tile
    n += 2 * th * d_act * w_isz            # W_dec tile
    n += 2 * d_act * w_isz                 # b_dec
    n += 2 * tm * d_act * out_isz          # x_reconstruct out
    n += 2 * tm * th * out_isz             # acts out
    n += 2 * 2 * tm * 128 * 4              # l2 / l1 slabs
    n += tm * d_act * a_isz                # hoisted x_cent scratch
    n += tm * 128 * 4                      # l1 accumulator scratch
    if not acc_in_out:
        n += tm * d_act * 4                # f32 x_rec accumulator scratch
    return n


def _batch_tile_candidates(B, tm_target, prefer_split):
    b8 = _round_up(max(B, 1), 8)
    cands = []
    if prefer_split and b8 >= 16:
        cands.append(min(_round_up((b8 + 1) // 2, 8), tm_target))
    if b8 <= tm_target:
        cands.append(b8)
    for t in (1024, 768, 512, 384, 256, 192, 128, 96, 64, 32, 16, 8):
        if t <= min(tm_target, b8):
            cands.append(t)
    if not cands:
        cands.append(b8)
    out, seen = [], set()
    for t in cands:
        if t not in seen:
            out.append(t)
            seen.add(t)
    return out


def _hidden_tile_candidates(d_hidden, max_tile=2048):
    """Full d_hidden first (weights VMEM-resident when it fits), then divisors
    that are multiples of 256 (MXU-friendly on v6e/v7x), then 128-multiples."""
    cands = [d_hidden]
    cap = min(d_hidden - 1, max_tile)
    if cap >= 256:
        for t in range(cap - cap % 256, 255, -256):
            if d_hidden % t == 0:
                cands.append(t)
    if cap >= 128:
        for t in range(cap - cap % 128, 127, -128):
            if d_hidden % t == 0 and t % 256 != 0:
                cands.append(t)
    return cands


def _choose_tiles(B, d_act, d_hidden, a_isz, w_isz, out_isz,
                  budget, tm_target, prefer_split, acc_in_out):
    tm_cands = _batch_tile_candidates(B, tm_target, prefer_split)
    th_cands = _hidden_tile_candidates(d_hidden)
    for tm in tm_cands:
        for th in th_cands:
            if _vmem_estimate(tm, th, d_act, a_isz, w_isz, out_isz,
                              acc_in_out) <= budget:
                return tm, th
    # TODO(synk): d_hidden with no 128-multiple divisor and weights larger than
    # VMEM falls back to the smallest candidates and may exceed the budget.
    return tm_cands[-1], th_cands[-1]


# ---------------------------------------------------------------------------
# Wrapper
# ---------------------------------------------------------------------------
@functools.partial(jax.jit, static_argnames=("tm", "th", "tm_target"))
def sae_forward(A, W_enc, b_enc, W_dec, b_dec, *, tm=None, th=None, tm_target=1024):
    """Returns (x_reconstruct, acts, l2_loss, l1_loss) like the PyTorch forward()."""
    B, d_act = A.shape
    d_hidden = W_enc.shape[1]

    acc_in_out = (A.dtype == jnp.float32)
    a_isz = jnp.dtype(A.dtype).itemsize
    w_isz = jnp.dtype(W_enc.dtype).itemsize
    out_isz = a_isz

    capacity = _tpu_vmem_capacity_bytes()
    prefer_split = _prefer_two_batch_tiles()

    if tm is None or th is None:
        auto_tm, auto_th = _choose_tiles(
            B, d_act, d_hidden, a_isz, w_isz, out_isz,
            budget=int(capacity * 0.75), tm_target=tm_target,
            prefer_split=prefer_split, acc_in_out=acc_in_out)
        tm = auto_tm if tm is None else tm
        th = auto_th if th is None else th

    if d_hidden % th != 0:
        raise ValueError(f"hidden tile {th} must divide d_hidden {d_hidden}")
    if tm % 8 != 0:
        raise ValueError(f"batch tile {tm} must be a multiple of 8")

    b_pad = _round_up(B, tm)
    n_m = b_pad // tm
    n_h = d_hidden // th

    est = _vmem_estimate(tm, th, d_act, a_isz, w_isz, out_isz, acc_in_out)
    vmem_limit = int(max(min(est * 1.5 + (2 << 20), capacity - (2 << 20)),
                         32 << 20))

    A_p = A if b_pad == B else jnp.pad(A, ((0, b_pad - B), (0, 0)))
    b_enc2 = b_enc.reshape(1, d_hidden)
    b_dec2 = b_dec.reshape(1, d_act)

    kernel = functools.partial(_sae_kernel, acc_in_out=acc_in_out)
    scratch_shapes = [
        pltpu.VMEM((tm, d_act), A.dtype),      # hoisted x_cent
        pltpu.VMEM((tm, 128), jnp.float32),    # lane-partial l1 accumulator
    ]
    if not acc_in_out:
        scratch_shapes.append(pltpu.VMEM((tm, d_act), jnp.float32))  # f32 x_rec acc

    x_rec, acts, l2_slab, l1_slab = pl.pallas_call(
        kernel,
        out_shape=(
            jax.ShapeDtypeStruct((b_pad, d_act), A.dtype),
            jax.ShapeDtypeStruct((b_pad, d_hidden), A.dtype),
            jax.ShapeDtypeStruct((b_pad, 128), jnp.float32),
            jax.ShapeDtypeStruct((b_pad, 128), jnp.float32),
        ),
        grid_spec=pltpu.PrefetchScalarGridSpec(
            num_scalar_prefetch=0,
            grid=(n_m, n_h),
            in_specs=[
                pl.BlockSpec((tm, d_act), lambda i, h: (i, 0)),     # A tile
                pl.BlockSpec((d_act, th), lambda i, h: (0, h)),     # W_enc tile
                pl.BlockSpec((1, th), lambda i, h: (0, h)),         # b_enc tile
                pl.BlockSpec((th, d_act), lambda i, h: (h, 0)),     # W_dec tile
                pl.BlockSpec((1, d_act), lambda i, h: (0, 0)),      # b_dec
            ],
            out_specs=[
                pl.BlockSpec((tm, d_act), lambda i, h: (i, 0)),     # x_reconstruct
                pl.BlockSpec((tm, th), lambda i, h: (i, h)),        # acts
                pl.BlockSpec((tm, 128), lambda i, h: (i, 0)),       # l2 lane-partials
                pl.BlockSpec((tm, 128), lambda i, h: (i, 0)),       # l1 lane-partials
            ],
            scratch_shapes=scratch_shapes,
        ),
        compiler_params=pltpu.CompilerParams(
            dimension_semantics=("parallel", "arbitrary"),
            vmem_limit_bytes=vmem_limit,
        ),
    )(A_p, W_enc, b_enc2, W_dec, b_dec2)

    x_rec = x_rec[:B]
    acts = acts[:B]
    l2_loss = jnp.mean(jnp.sum(l2_slab[:B], axis=-1))
    l1_loss = jnp.mean(jnp.sum(l1_slab[:B], axis=-1))
    return x_rec, acts, l2_loss, l1_loss


# ---------------------------------------------------------------------------
# Parameter init mirroring the PyTorch module (shapes / normalization)
# ---------------------------------------------------------------------------
def init_params(d_activation, d_hidden, seed=0, dtype=jnp.float32):
    key = jax.random.PRNGKey(seed)
    # kaiming_uniform_ default: gain=sqrt(2), bound = gain*sqrt(3/fan_in)
    bound = jnp.sqrt(2.0) * jnp.sqrt(3.0 / d_activation)
    W_dec = jax.random.uniform(key, (d_hidden, d_activation),
                               minval=-bound, maxval=bound, dtype=jnp.float32)
    W_dec = W_dec / jnp.linalg.norm(W_dec, axis=-1, keepdims=True)
    W_dec = W_dec.astype(dtype)
    W_enc = W_dec.T.astype(dtype)
    b_enc = jnp.zeros((d_hidden,), dtype=dtype)
    b_dec = jnp.zeros((d_activation,), dtype=dtype)
    return W_enc, b_enc, W_dec, b_dec


def _reference(A, W_enc, b_enc, W_dec, b_dec):
    x_cent = A - b_dec
    acts = jax.nn.relu(x_cent @ W_enc + b_enc)
    x_rec = acts @ W_dec + b_dec
    l2 = jnp.mean(jnp.sum((x_rec.astype(jnp.float32) - A.astype(jnp.float32)) ** 2, -1))
    l1 = jnp.mean(jnp.sum(jnp.abs(acts.astype(jnp.float32)), -1))
    return x_rec, acts, l2, l1


if __name__ == "__main__":
    batch, d_activation, d_hidden = 16, 128, 512

    W_enc, b_enc, W_dec, b_dec = init_params(d_activation, d_hidden, seed=0)
    A = jax.random.normal(jax.random.PRNGKey(0), (batch, d_activation),
                          dtype=jnp.float32)

    xr_r, ac_r, l2_r, l1_r = _reference(A, W_enc, b_enc, W_dec, b_dec)

    # 1) Auto-tiled path (weights VMEM-resident at these small sizes).
    out = sae_forward(A, W_enc, b_enc, W_dec, b_dec)
    jax.block_until_ready(out)
    x_rec, acts, l2_loss, l1_loss = out
    assert jnp.allclose(x_rec, xr_r, atol=1e-4, rtol=1e-4)
    assert jnp.allclose(acts, ac_r, atol=1e-4, rtol=1e-4)
    assert jnp.allclose(l2_loss, l2_r, atol=1e-3, rtol=1e-3)
    assert jnp.allclose(l1_loss, l1_r, atol=1e-3, rtol=1e-3)

    # 2) Forced multi-tile path (batch x hidden grid, accumulation across h).
    out2 = sae_forward(A, W_enc, b_enc, W_dec, b_dec, tm=8, th=128)
    jax.block_until_ready(out2)
    x2, a2, l22, l12 = out2
    assert jnp.allclose(x2, xr_r, atol=1e-4, rtol=1e-4)
    assert jnp.allclose(a2, ac_r, atol=1e-4, rtol=1e-4)
    assert jnp.allclose(l22, l2_r, atol=1e-3, rtol=1e-3)
    assert jnp.allclose(l12, l1_r, atol=1e-3, rtol=1e-3)

    # 3) bf16 path (exercises the separate f32 accumulator scratch).
    A16 = A.astype(jnp.bfloat16)
    p16 = [p.astype(jnp.bfloat16) for p in (W_enc, b_enc, W_dec, b_dec)]
    out3 = sae_forward(A16, *p16)
    jax.block_until_ready(out3)
    assert out3[0].shape == (batch, d_activation)
    assert out3[1].shape == (batch, d_hidden)
    assert bool(jnp.isfinite(out3[2])) and bool(jnp.isfinite(out3[3]))

    print("KERNEL_OK")
</pallas_src>

<mosaic_0001>
module attributes {stable_mosaic.version = 11 : i64} {
  func.func @_sae_kernel(%arg0: i32, %arg1: i32, %arg2: memref<16x128xf32, #tpu.memory_space<vmem>>, %arg3: memref<128x512xf32, #tpu.memory_space<vmem>>, %arg4: memref<1x512xf32, #tpu.memory_space<vmem>>, %arg5: memref<512x128xf32, #tpu.memory_space<vmem>>, %arg6: memref<1x128xf32, #tpu.memory_space<vmem>>, %arg7: memref<16x128xf32, #tpu.memory_space<vmem>>, %arg8: memref<16x512xf32, #tpu.memory_space<vmem>>, %arg9: memref<16x128xf32, #tpu.memory_space<vmem>>, %arg10: memref<16x128xf32, #tpu.memory_space<vmem>>, %arg11: memref<16x128xf32, #tpu.memory_space<vmem>>, %arg12: memref<16x128xf32, #tpu.memory_space<vmem>>) attributes {dimension_semantics = [#tpu.dimension_semantics<parallel>, #tpu.dimension_semantics<arbitrary>], iteration_bounds = array<i64: 1, 1>, scalar_prefetch = 0 : i64, scratch_operands = 2 : i64, tpu.core_type = #tpu.core_type<tc>, window_params = [{transform_indices = @transform_0, window_bounds = array<i64: 16, 128>}, {transform_indices = @transform_1, window_bounds = array<i64: 128, 512>}, {transform_indices = @transform_2, window_bounds = array<i64: 1, 512>}, {transform_indices = @transform_3, window_bounds = array<i64: 512, 128>}, {pipeline_mode = #tpu.pipeline_mode<synchronous>, transform_indices = @transform_4, window_bounds = array<i64: 1, 128>}, {transform_indices = @transform_5, window_bounds = array<i64: 16, 128>}, {transform_indices = @transform_6, window_bounds = array<i64: 16, 512>}, {transform_indices = @transform_7, window_bounds = array<i64: 16, 128>}, {transform_indices = @transform_8, window_bounds = array<i64: 16, 128>}]} {
    %c0 = arith.constant 0 : index
    %c0_0 = arith.constant 0 : index
    %0 = vector.load %arg6[%c0, %c0_0] : memref<1x128xf32, #tpu.memory_space<vmem>>, vector<1x128xf32>
    %c0_i32 = arith.constant 0 : i32
    %1 = arith.cmpi eq, %arg1, %c0_i32 : i32
    %2 = arith.extui %1 : i1 to i32
    %c0_i32_1 = arith.constant 0 : i32
    %3 = arith.cmpi ne, %2, %c0_i32_1 : i32
    scf.if %3 {
      %c0_24 = arith.constant 0 : index
      %c0_25 = arith.constant 0 : index
      %31 = vector.load %arg2[%c0_24, %c0_25] : memref<16x128xf32, #tpu.memory_space<vmem>>, vector<16x128xf32>
      %32 = vector.broadcast %0 : vector<1x128xf32> to vector<16x128xf32>
      %33 = arith.subf %31, %32 : vector<16x128xf32>
      %c0_26 = arith.constant 0 : index
      %c0_27 = arith.constant 0 : index
      %34 = vector.load %arg11[%c0_26, %c0_27] : memref<16x128xf32, #tpu.memory_space<vmem>>, vector<16x128xf32>
      tpu.vector_store %arg11[%c0_26, %c0_27], %33 {strides = array<i32>} : memref<16x128xf32, #tpu.memory_space<vmem>>, vector<16x128xf32>,
      %cst_28 = arith.constant 0.000000e+00 : f32
      %35 = vector.broadcast %cst_28 : f32 to vector<16x128xf32>
      %c0_29 = arith.constant 0 : index
      %c0_30 = arith.constant 0 : index
      %36 = vector.load %arg7[%c0_29, %c0_30] : memref<16x128xf32, #tpu.memory_space<vmem>>, vector<16x128xf32>
      tpu.vector_store %arg7[%c0_29, %c0_30], %35 {strides = array<i32>} : memref<16x128xf32, #tpu.memory_space<vmem>>, vector<16x128xf32>,
      %cst_31 = arith.constant 0.000000e+00 : f32
      %37 = vector.broadcast %cst_31 : f32 to vector<16x128xf32>
      %c0_32 = arith.constant 0 : index
      %c0_33 = arith.constant 0 : index
      %38 = vector.load %arg12[%c0_32, %c0_33] : memref<16x128xf32, #tpu.memory_space<vmem>>, vector<16x128xf32>
      tpu.vector_store %arg12[%c0_32, %c0_33], %37 {strides = array<i32>} : memref<16x128xf32, #tpu.memory_space<vmem>>, vector<16x128xf32>,
    } else {
    }
    %c0_2 = arith.constant 0 : index
    %c0_3 = arith.constant 0 : index
    %4 = vector.load %arg11[%c0_2, %c0_3] : memref<16x128xf32, #tpu.memory_space<vmem>>, vector<16x128xf32>
    %c0_4 = arith.constant 0 : index
    %c0_5 = arith.constant 0 : index
    %5 = vector.load %arg3[%c0_4, %c0_5] : memref<128x512xf32, #tpu.memory_space<vmem>>, vector<128x512xf32>
    %cst = arith.constant dense<0.000000e+00> : vector<16x512xf32>
    %6 = tpu.matmul %4, %5, %cst {dimension_numbers = #tpu.dot_dimension_numbers<[1], [0], [0], [1], [0, 0, 1, 1], [], []>} : vector<16x128xf32>, vector<128x512xf32>, vector<16x512xf32> -> vector<16x512xf32>
    %c0_6 = arith.constant 0 : index
    %c0_7 = arith.constant 0 : index
    %7 = vector.load %arg4[%c0_6, %c0_7] : memref<1x512xf32, #tpu.memory_space<vmem>>, vector<1x512xf32>
    %8 = vector.broadcast %7 : vector<1x512xf32> to vector<16x512xf32>
    %9 = arith.addf %6, %8 : vector<16x512xf32>
    %cst_8 = arith.constant 0.000000e+00 : f32
    %10 = vector.broadcast %cst_8 : f32 to vector<16x512xf32>
    %11 = arith.maximumf %9, %10 : vector<16x512xf32>
    %c0_9 = arith.constant 0 : index
    %c0_10 = arith.constant 0 : index
    %12 = vector.load %arg8[%c0_9, %c0_10] : memref<16x512xf32, #tpu.memory_space<vmem>>, vector<16x512xf32>
    tpu.vector_store %arg8[%c0_9, %c0_10], %11 {strides = array<i32>} : memref<16x512xf32, #tpu.memory_space<vmem>>, vector<16x512xf32>,
    %c0_11 = arith.constant 0 : index
    %c0_12 = arith.constant 0 : index
    %13 = vector.load %arg5[%c0_11, %c0_12] : memref<512x128xf32, #tpu.memory_space<vmem>>, vector<512x128xf32>
    %cst_13 = arith.constant dense<0.000000e+00> : vector<16x128xf32>
    %14 = tpu.matmul %11, %13, %cst_13 {dimension_numbers = #tpu.dot_dimension_numbers<[1], [0], [0], [1], [0, 0, 1, 1], [], []>} : vector<16x512xf32>, vector<512x128xf32>, vector<16x128xf32> -> vector<16x128xf32>
    %c0_14 = arith.constant 0 : index
    %c0_15 = arith.constant 0 : index
    %15 = vector.load %arg7[%c0_14, %c0_15] : memref<16x128xf32, #tpu.memory_space<vmem>>, vector<16x128xf32>
    %16 = arith.addf %15, %14 : vector<16x128xf32>
    %c0_16 = arith.constant 0 : index
    %c0_17 = arith.constant 0 : index
    %17 = vector.load %arg7[%c0_16, %c0_17] : memref<16x128xf32, #tpu.memory_space<vmem>>, vector<16x128xf32>
    tpu.vector_store %arg7[%c0_16, %c0_17], %16 {strides = array<i32>} : memref<16x128xf32, #tpu.memory_space<vmem>>, vector<16x128xf32>,
    %c0_18 = arith.constant 0 : index
    %c0_19 = arith.constant 0 : index
    %18 = vector.load %arg12[%c0_18, %c0_19] : memref<16x128xf32, #tpu.memory_space<vmem>>, vector<16x128xf32>
    %19 = vector.extract_strided_slice %11 {offsets = [0, 0], sizes = [16, 128], strides = [1, 1]} : vector<16x512xf32> to vector<16x128xf32>
    %20 = vector.extract_strided_slice %11 {offsets = [0, 128], sizes = [16, 128], strides = [1, 1]} : vector<16x512xf32> to vector<16x128xf32>
    %21 = arith.addf %19, %20 : vector<16x128xf32>
    %22 = vector.extract_strided_slice %11 {offsets = [0, 256], sizes = [16, 128], strides = [1, 1]} : vector<16x512xf32> to vector<16x128xf32>
    %23 = arith.addf %21, %22 : vector<16x128xf32>
    %24 = vector.extract_strided_slice %11 {offsets = [0, 384], sizes = [16, 128], strides = [1, 1]} : vector<16x512xf32> to vector<16x128xf32>
    %25 = arith.addf %23, %24 : vector<16x128xf32>
    %26 = arith.addf %18, %25 : vector<16x128xf32>
    %c0_20 = arith.constant 0 : index
    %c0_21 = arith.constant 0 : index
    %27 = vector.load %arg12[%c0_20, %c0_21] : memref<16x128xf32, #tpu.memory_space<vmem>>, vector<16x128xf32>
    tpu.vector_store %arg12[%c0_20, %c0_21], %26 {strides = array<i32>} : memref<16x128xf32, #tpu.memory_space<vmem>>, vector<16x128xf32>,
    %c0_i32_22 = arith.constant 0 : i32
    %28 = arith.cmpi eq, %arg1, %c0_i32_22 : i32
    %29 = arith.extui %28 : i1 to i32
    %c0_i32_23 = arith.constant 0 : i32
    %30 = arith.cmpi ne, %29, %c0_i32_23 : i32
    scf.if %30 {
      %c0_24 = arith.constant 0 : index
      %c0_25 = arith.constant 0 : index
      %31 = vector.load %arg2[%c0_24, %c0_25] : memref<16x128xf32, #tpu.memory_space<vmem>>, vector<16x128xf32>
      %c0_26 = arith.constant 0 : index
      %c0_27 = arith.constant 0 : index
      %32 = vector.load %arg7[%c0_26, %c0_27] : memref<16x128xf32, #tpu.memory_space<vmem>>, vector<16x128xf32>
      %33 = vector.broadcast %0 : vector<1x128xf32> to vector<16x128xf32>
      %34 = arith.addf %32, %33 : vector<16x128xf32>
      %c0_28 = arith.constant 0 : index
      %c0_29 = arith.constant 0 : index
      %35 = vector.load %arg7[%c0_28, %c0_29] : memref<16x128xf32, #tpu.memory_space<vmem>>, vector<16x128xf32>
      tpu.vector_store %arg7[%c0_28, %c0_29], %34 {strides = array<i32>} : memref<16x128xf32, #tpu.memory_space<vmem>>, vector<16x128xf32>,
      %c0_30 = arith.constant 0 : index
      %c0_31 = arith.constant 0 : index
      %36 = vector.load %arg7[%c0_30, %c0_31] : memref<16x128xf32, #tpu.memory_space<vmem>>, vector<16x128xf32>
      %37 = arith.subf %36, %31 : vector<16x128xf32>
      %38 = arith.mulf %37, %37 : vector<16x128xf32>
      %c0_32 = arith.constant 0 : index
      %c0_33 = arith.constant 0 : index
      %39 = vector.load %arg9[%c0_32, %c0_33] : memref<16x128xf32, #tpu.memory_space<vmem>>, vector<16x128xf32>
      tpu.vector_store %arg9[%c0_32, %c0_33], %38 {strides = array<i32>} : memref<16x128xf32, #tpu.memory_space<vmem>>, vector<16x128xf32>,
      %c0_34 = arith.constant 0 : index
      %c0_35 = arith.constant 0 : index
      %40 = vector.load %arg12[%c0_34, %c0_35] : memref<16x128xf32, #tpu.memory_space<vmem>>, vector<16x128xf32>
      %c0_36 = arith.constant 0 : index
      %c0_37 = arith.constant 0 : index
      %41 = vector.load %arg10[%c0_36, %c0_37] : memref<16x128xf32, #tpu.memory_space<vmem>>, vector<16x128xf32>
      tpu.vector_store %arg10[%c0_36, %c0_37], %40 {strides = array<i32>} : memref<16x128xf32, #tpu.memory_space<vmem>>, vector<16x128xf32>,
    } else {
    }
    return
  }
  func.func @transform_0(%arg0: i32, %arg1: i32) -> (i32, i32) {
    %c0_i32 = arith.constant 0 : i32
    %c0_i32_0 = arith.constant 0 : i32
    return %arg0, %c0_i32 : i32, i32
  }
  func.func @transform_1(%arg0: i32, %arg1: i32) -> (i32, i32) {
    %c0_i32 = arith.constant 0 : i32
    %c0_i32_0 = arith.constant 0 : i32
    return %c0_i32, %arg1 : i32, i32
  }
  func.func @transform_2(%arg0: i32, %arg1: i32) -> (i32, i32) {
    %c0_i32 = arith.constant 0 : i32
    %c0_i32_0 = arith.constant 0 : i32
    return %c0_i32, %arg1 : i32, i32
  }
  func.func @transform_3(%arg0: i32, %arg1: i32) -> (i32, i32) {
    %c0_i32 = arith.constant 0 : i32
    %c0_i32_0 = arith.constant 0 : i32
    return %arg1, %c0_i32 : i32, i32
  }
  func.func @transform_4(%arg0: i32, %arg1: i32) -> (i32, i32) {
    %c0_i32 = arith.constant 0 : i32
    %c0_i32_0 = arith.constant 0 : i32
    %c0_i32_1 = arith.constant 0 : i32
    return %c0_i32, %c0_i32_0 : i32, i32
  }
  func.func @transform_5(%arg0: i32, %arg1: i32) -> (i32, i32) {
    %c0_i32 = arith.constant 0 : i32
    %c0_i32_0 = arith.constant 0 : i32
    return %arg0, %c0_i32 : i32, i32
  }
  func.func @transform_6(%arg0: i32, %arg1: i32) -> (i32, i32) {
    %c0_i32 = arith.constant 0 : i32
    return %arg0, %arg1 : i32, i32
  }
  func.func @transform_7(%arg0: i32, %arg1: i32) -> (i32, i32) {
    %c0_i32 = arith.constant 0 : i32
    %c0_i32_0 = arith.constant 0 : i32
    return %arg0, %c0_i32 : i32, i32
  }
  func.func @transform_8(%arg0: i32, %arg1: i32) -> (i32, i32) {
    %c0_i32 = arith.constant 0 : i32
    %c0_i32_0 = arith.constant 0 : i32
    return %arg0, %c0_i32 : i32, i32
  }
}

</mosaic_0001>

<llo_original>
// kernel: sae_forward.1
$region0: #{sae_forward.1}
  #allocation0 [shape = 'u32[]', space=smem, size = 0x4, offset = 0x4, fixed_abs, tag = 'smem constant byte address 0x4 - core index']
  #allocation1 [shape = 'u32[144,128]{1,0:T(1,128)}', space=vmem, size = 0x12000, scoped, tag = 'internal scratch']
  #allocation2 [shape = 'f32[16,128]{1,0:T(8,128)}', space=vmem, size = 0x2000, scoped, tag = 'scratch operand']
  #allocation3 [shape = 'f32[16,128]{1,0:T(8,128)}', space=vmem, size = 0x2000, scoped, tag = 'scratch operand']
  %s0 = inlined_call_operand.hbm [shape: f32[16,128], index: 0, kind: input, shape index: {}]
  %s1 = inlined_call_operand.hbm [shape: f32[128,512], index: 1, kind: input, shape index: {}]
  %s2 = inlined_call_operand.vmem [shape: f32[1,512], index: 2, kind: input, shape index: {}]
  %s3 = inlined_call_operand.hbm [shape: f32[512,128], index: 3, kind: input, shape index: {}]
  %s4 = inlined_call_operand.vmem [shape: f32[1,128], index: 4, kind: input, shape index: {}]
  %s5 = inlined_call_operand.hbm [shape: f32[16,128], index: 5, kind: output, shape index: {0}]
  %s6 = inlined_call_operand.hbm [shape: f32[16,512], index: 6, kind: output, shape index: {1}]
  %s7 = inlined_call_operand.vmem [shape: f32[16,128], index: 7, kind: output, shape index: {2}]
  %s8 = inlined_call_operand.vmem [shape: f32[16,128], index: 8, kind: output, shape index: {3}]
  %9 = xla_tuple %s5, %s6, %s7, %s8
  %s10 = sld [smem:[#allocation0]]
  $region74: #{sae_forward.1} parent=0
    _
  %s12 = ssub.s32 1, %s10
  %s13 = scalar_select 0, %s12, %s10
  $region1: #{sae_forward.1} parent=0
    #allocation4 [shape = 'u8[8192]{0}', space=vmem, size = 0x2000, scoped, tag = 'input window, operand 0, single buffered']
    #allocation5 [shape = 's32[1]{0}', space=sflag, size = 0x4, scoped, tag = 'scoped memory for sae_forward.1']
    #allocation6 [shape = 's32[1]{0}', space=sflag, size = 0x4, scoped, tag = 'scoped memory for sae_forward.1']
    #allocation7 [shape = 'u8[262144]{0}', space=vmem, size = 0x40000, scoped, tag = 'input window, operand 1, single buffered']
    #allocation8 [shape = 's32[1]{0}', space=sflag, size = 0x4, scoped, tag = 'scoped memory for sae_forward.1']
    #allocation9 [shape = 'u8[262144]{0}', space=vmem, size = 0x40000, scoped, tag = 'input window, operand 3, single buffered']
    #allocation10 [shape = 'u8[8192]{0}', space=vmem, size = 0x2000, scoped, tag = 'output window, operand 0, single buffered']
    #allocation11 [shape = 'u8[32768]{0}', space=vmem, size = 0x8000, scoped, tag = 'output window, operand 1, single buffered']
    #allocation12 [shape = 's32[1]{0}', space=sflag, size = 0x4, scoped, tag = 'scoped memory for sae_forward.1']
    %14 = vsyncpa [#allocation5], 0
    %15 = vsyncpa [#allocation8], 0
    %16 = vsyncpa [#allocation6], 0
    %17 = vsyncpa [#allocation12], 0
    // Predicated region
    $region2: #{sae_forward.1} parent=1 // pred_check
      _
    $region3: #{sae_forward.1} parent=1 // pred_check_branch
      %19 = sbr.rel (0) target = $region5
    $region4: #{sae_forward.1} parent=1 // pred_region
      %s21 = ssub.s32 256, 256
      %22 = vsyncadd [#allocation5], %s21
      %s23 = sshll.u32 [#allocation4], 4
      %s24 = int_to_ptr.vmem [resolvable:$true] %s23
      %29 = dma.hbm_to_vmem [thread:$0]  %s0, 256, %s24, [#allocation5], 128, 128, 8
    $region5: #{sae_forward.1} parent=1 // pred_fallthru
      _
    // Predicated region
    $region6: #{sae_forward.1} parent=1 // pred_check
      _
    $region7: #{sae_forward.1} parent=1 // pred_check_branch
      %31 = sbr.rel (0) target = $region9
    $region8: #{sae_forward.1} parent=1 // pred_region
      %s33 = ssub.s32 8192, 8192
      %34 = vsyncadd [#allocation8], %s33
      %s35 = sshll.u32 [#allocation7], 4
      %s36 = int_to_ptr.vmem [resolvable:$true] %s35
      %41 = dma.hbm_to_vmem [thread:$0]  %s1, 8192, %s36, [#allocation8], 512, 512, 32
    $region9: #{sae_forward.1} parent=1 // pred_fallthru
      _
    // Predicated region
    $region10: #{sae_forward.1} parent=1 // pred_check
      _
    $region11: #{sae_forward.1} parent=1 // pred_check_branch
      %43 = sbr.rel (0) target = $region13
    $region12: #{sae_forward.1} parent=1 // pred_region
      _
    $region13: #{sae_forward.1} parent=1 // pred_fallthru
      _
    // Predicated region
    $region14: #{sae_forward.1} parent=1 // pred_check
      _
    $region15: #{sae_forward.1} parent=1 // pred_check_branch
      %45 = sbr.rel (0) target = $region17
    $region16: #{sae_forward.1} parent=1 // pred_region
      %s47 = ssub.s32 8192, 8192
      %48 = vsyncadd [#allocation8], %s47
      %s49 = sshll.u32 [#allocation9], 4
      %s50 = int_to_ptr.vmem [resolvable:$true] %s49
      %55 = dma.hbm_to_vmem [thread:$0]  %s3, 8192, %s50, [#allocation8], 128, 128, 8
    $region17: #{sae_forward.1} parent=1 // pred_fallthru
      _
    // Predicated region
    $region18: #{sae_forward.1} parent=1 // pred_check
      _
    $region19: #{sae_forward.1} parent=1 // pred_check_branch
      %57 = sbr.rel (0) target = $region21
    $region20: #{sae_forward.1} parent=1 // pred_region
      _
    $region21: #{sae_forward.1} parent=1 // pred_fallthru
      _
    // Predicated region
    $region22: #{sae_forward.1} parent=1 // pred_check
      _
    $region23: #{sae_forward.1} parent=1 // pred_check_branch
      %59 = sbr.rel (0) target = $region25
    $region24: #{sae_forward.1} parent=1 // pred_region
      %60 = dma.done [#allocation5], 256
    $region25: #{sae_forward.1} parent=1 // pred_fallthru
      _
    // Predicated region
    $region26: #{sae_forward.1} parent=1 // pred_check
      _
    $region27: #{sae_forward.1} parent=1 // pred_check_branch
      %62 = sbr.rel (0) target = $region29
    $region28: #{sae_forward.1} parent=1 // pred_region
      %63 = dma.done [#allocation8], 8192
    $region29: #{sae_forward.1} parent=1 // pred_fallthru
      _
    // Predicated region
    $region30: #{sae_forward.1} parent=1 // pred_check
      _
    $region31: #{sae_forward.1} parent=1 // pred_check_branch
      %65 = sbr.rel (0) target = $region33
    $region32: #{sae_forward.1} parent=1 // pred_region
      %66 = dma.done [#allocation8], 8192
    $region33: #{sae_forward.1} parent=1 // pred_fallthru
      _
    %v67 = vld [vmem:[%s4] sm:$0x1]
    %p68 = scmp.eq.s32.totalorder 0, 0
    // Predicated region
    $region34: #{sae_forward.1} parent=1 // pred_check
      %p69 = pneg %p68
    $region35: #{sae_forward.1} parent=1 // pred_check_branch
      %71 = sbr.rel (%p69) target = $region37
    $region36: #{sae_forward.1} parent=1 // pred_region
      %v72 = vld [vmem:[#allocation4] sm:$0xff]
      %v73 = vld [vmem:[#allocation4 + $0x8] sm:$0xff]
      %v75 = vlaneseq
      %v76 = vshrl.u32 %v75, 7
      %v77 = vsub.s32 0, %v76
      %v78 = vrot.slane %v67, %v77
      %v80 = vsub.f32 %v72, %v78
      %v81 = vsub.f32 %v73, %v78
      %82 = vst [vmem:[#allocation2] sm:$0xff] %v80
      %83 = vst [vmem:[#allocation2 + $0x8] sm:$0xff] %v81
      %84 = vst [vmem:[#allocation10] sm:$0xff] 0.0
      %85 = vst [vmem:[#allocation10 + $0x8] sm:$0xff] 0.0
      %86 = vst [vmem:[#allocation3] sm:$0xff] 0.0
      %87 = vst [vmem:[#allocation3 + $0x8] sm:$0xff] 0.0
    $region37: #{sae_forward.1} parent=1 // pred_fallthru
      _
    %v88 = vld [vmem:[#allocation2] sm:$0xff]
    %v89 = vld [vmem:[#allocation2 + $0x8] sm:$0xff]
    %v90 = vld [vmem:[#allocation7] sm:$0xff]
    %v91 = vld [vmem:[#allocation7 + $0x8] sm:$0xff]
    %v92 = vld [vmem:[#allocation7 + $0x10] sm:$0xff]
    %v93 = vld [vmem:[#allocation7 + $0x18] sm:$0xff]
    %v94 = vld [vmem:[#allocation7 + $0x20] sm:$0xff]
    %v95 = vld [vmem:[#allocation7 + $0x28] sm:$0xff]
    %v96 = vld [vmem:[#allocation7 + $0x30] sm:$0xff]
    %v97 = vld [vmem:[#allocation7 + $0x38] sm:$0xff]
    %v98 = vld [vmem:[#allocation7 + $0x40] sm:$0xff]
    %v99 = vld [vmem:[#allocation7 + $0x48] sm:$0xff]
    %v100 = vld [vmem:[#allocation7 + $0x50] sm:$0xff]
    %v101 = vld [vmem:[#allocation7 + $0x58] sm:$0xff]
    %v102 = vld [vmem:[#allocation7 + $0x60] sm:$0xff]
    %v103 = vld [vmem:[#allocation7 + $0x68] sm:$0xff]
    %v104 = vld [vmem:[#allocation7 + $0x70] sm:$0xff]
    %v105 = vld [vmem:[#allocation7 + $0x78] sm:$0xff]
    %v106 = vld [vmem:[#allocation7 + $0x80] sm:$0xff]
    %v107 = vld [vmem:[#allocation7 + $0x88] sm:$0xff]
    %v108 = vld [vmem:[#allocation7 + $0x90] sm:$0xff]
    %v109 = vld [vmem:[#allocation7 + $0x98] sm:$0xff]
    %v110 = vld [vmem:[#allocation7 + $0xa0] sm:$0xff]
    %v111 = vld [vmem:[#allocation7 + $0xa8] sm:$0xff]
    %v112 = vld [vmem:[#allocation7 + $0xb0] sm:$0xff]
    %v113 = vld [vmem:[#allocation7 + $0xb8] sm:$0xff]
    %v114 = vld [vmem:[#allocation7 + $0xc0] sm:$0xff]
    %v115 = vld [vmem:[#allocation7 + $0xc8] sm:$0xff]
    %v116 = vld [vmem:[#allocation7 + $0xd0] sm:$0xff]
    %v117 = vld [vmem:[#allocation7 + $0xd8] sm:$0xff]
    %v118 = vld [vmem:[#allocation7 + $0xe0] sm:$0xff]
    %v119 = vld [vmem:[#allocation7 + $0xe8] sm:$0xff]
    %v120 = vld [vmem:[#allocation7 + $0xf0] sm:$0xff]
    %v121 = vld [vmem:[#allocation7 + $0xf8] sm:$0xff]
    %v122 = vld [vmem:[#allocation7 + $0x100] sm:$0xff]
    %v123 = vld [vmem:[#allocation7 + $0x108] sm:$0xff]
    %v124 = vld [vmem:[#allocation7 + $0x110] sm:$0xff]
    %v125 = vld [vmem:[#allocation7 + $0x118] sm:$0xff]
    %v126 = vld [vmem:[#allocation7 + $0x120] sm:$0xff]
    %v127 = vld [vmem:[#allocation7 + $0x128] sm:$0xff]
    %v128 = vld [vmem:[#allocation7 + $0x130] sm:$0xff]
    %v129 = vld [vmem:[#allocation7 + $0x138] sm:$0xff]
    %v130 = vld [vmem:[#allocation7 + $0x140] sm:$0xff]
    %v131 = vld [vmem:[#allocation7 + $0x148] sm:$0xff]
    %v132 = vld [vmem:[#allocation7 + $0x150] sm:$0xff]
    %v133 = vld [vmem:[#allocation7 + $0x158] sm:$0xff]
    %v134 = vld [vmem:[#allocation7 + $0x160] sm:$0xff]
    %v135 = vld [vmem:[#allocation7 + $0x168] sm:$0xff]
    %v136 = vld [vmem:[#allocation7 + $0x170] sm:$0xff]
    %v137 = vld [vmem:[#allocation7 + $0x178] sm:$0xff]
    %v138 = vld [vmem:[#allocation7 + $0x180] sm:$0xff]
    %v139 = vld [vmem:[#allocation7 + $0x188] sm:$0xff]
    %v140 = vld [vmem:[#allocation7 + $0x190] sm:$0xff]
    %v141 = vld [vmem:[#allocation7 + $0x198] sm:$0xff]
    %v142 = vld [vmem:[#allocation7 + $0x1a0] sm:$0xff]
    %v143 = vld [vmem:[#allocation7 + $0x1a8] sm:$0xff]
    %v144 = vld [vmem:[#allocation7 + $0x1b0] sm:$0xff]
    %v145 = vld [vmem:[#allocation7 + $0x1b8] sm:$0xff]
    %v146 = vld [vmem:[#allocation7 + $0x1c0] sm:$0xff]
    %v147 = vld [vmem:[#allocation7 + $0x1c8] sm:$0xff]
    %v148 = vld [vmem:[#allocation7 + $0x1d0] sm:$0xff]
    %v149 = vld [vmem:[#allocation7 + $0x1d8] sm:$0xff]
    %v150 = vld [vmem:[#allocation7 + $0x1e0] sm:$0xff]
    %v151 = vld [vmem:[#allocation7 + $0x1e8] sm:$0xff]
    %v152 = vld [vmem:[#allocation7 + $0x1f0] sm:$0xff]
    %v153 = vld [vmem:[#allocation7 + $0x1f8] sm:$0xff]
    %v154 = vld [vmem:[%s2] sm:$0xf]
    %v156 = vlaneseq
    %v157 = vshrl.u32 %v156, 7
    %v158 = vsub.s32 0, %v157
    %v159 = vrot.slane %v154, %v158
    %v160 = vlaneseq
    %v161 = vshrl.u32 %v160, 7
    %v162 = vsub.s32 1, %v161
    %v163 = vrot.slane %v154, %v162
    %v164 = vlaneseq
    %v165 = vshrl.u32 %v164, 7
    %v166 = vsub.s32 2, %v165
    %v167 = vrot.slane %v154, %v166
    %v168 = vlaneseq
    %v169 = vshrl.u32 %v168, 7
    %v170 = vsub.s32 3, %v169
    %v171 = vrot.slane %v154, %v170
    %176 = vmatprep.subr.mxu0 %v91
    %177 = vmatpush1.msra.mxu0 %v90
    %178 = vmatprep.subr.mxu0 %v95
    %179 = vmatpush1.msra.mxu0 %v94
    %180 = vmatprep.subr.mxu0 %v99
    %181 = vmatpush1.msra.mxu0 %v98
    %182 = vmatprep.subr.mxu0 %v103
    %183 = vmatpush1.msra.mxu0 %v102
    %184 = vmatprep.subr.mxu0 %v107
    %185 = vmatpush1.msra.mxu0 %v106
    %186 = vmatprep.subr.mxu0 %v111
    %187 = vmatpush1.msra.mxu0 %v110
    %188 = vmatprep.subr.mxu0 %v115
    %189 = vmatpush1.msra.mxu0 %v114
    %190 = vmatprep.subr.mxu0 %v119
    %191 = vmatpush1.msra.mxu0 %v118
    %192 = vmatprep.subr.mxu0 %v123
    %193 = vmatpush1.msra.mxu0 %v122
    %194 = vmatprep.subr.mxu0 %v127
    %195 = vmatpush1.msra.mxu0 %v126
    %196 = vmatprep.subr.mxu0 %v131
    %197 = vmatpush1.msra.mxu0 %v130
    %198 = vmatprep.subr.mxu0 %v135
    %199 = vmatpush1.msra.mxu0 %v134
    %200 = vmatprep.subr.mxu0 %v139
    %201 = vmatpush1.msra.mxu0 %v138
    %202 = vmatprep.subr.mxu0 %v143
    %203 = vmatpush1.msra.mxu0 %v142
    %204 = vmatprep.subr.mxu0 %v147
    %205 = vmatpush1.msra.mxu0 %v146
    %206 = vmatprep.subr.mxu0 %v151
    %207 = vmatpush1.msra.mxu0 %v150
    %208 = vmatprep.subr.mxu0 0.0
    %209 = vmatpush1.msra.mxu0 0.0
    %210 = vmatprep.subr.mxu0 0.0
    %211 = vmatpush1.msra.mxu0 0.0
    %212 = vmatprep.subr.mxu0 0.0
    %213 = vmatpush1.msra.mxu0 0.0
    %214 = vmatprep.subr.mxu0 0.0
    %215 = vmatpush1.msra.mxu0 0.0
    %216 = vmatprep.subr.mxu0 0.0
    %217 = vmatpush1.msra.mxu0 0.0
    %218 = vmatprep.subr.mxu0 0.0
    %219 = vmatpush1.msra.mxu0 0.0
    %220 = vmatprep.subr.mxu0 0.0
    %221 = vmatpush1.msra.mxu0 0.0
    %222 = vmatprep.subr.mxu0 0.0
    %223 = vmatpush1.msra.mxu0 0.0
    %224 = vmatprep.subr.mxu0 0.0
    %225 = vmatpush1.msra.mxu0 0.0
    %226 = vmatprep.subr.mxu0 0.0
    %227 = vmatpush1.msra.mxu0 0.0
    %228 = vmatprep.subr.mxu0 0.0
    %229 = vmatpush1.msra.mxu0 0.0
    %230 = vmatprep.subr.mxu0 0.0
    %231 = vmatpush1.msra.mxu0 0.0
    %232 = vmatprep.subr.mxu0 0.0
    %233 = vmatpush1.msra.mxu0 0.0
    %234 = vmatprep.subr.mxu0 0.0
    %235 = vmatpush1.msra.mxu0 0.0
    %236 = vmatprep.subr.mxu0 0.0
    %237 = vmatpush1.msra.mxu0 0.0
    %238 = vmatprep.subr.mxu0 0.0
    %239 = vmatpush1.msra.mxu0 0.0
    %240 = vmatprep.mubr.f32.mxu0 0.0
    %241 = vmatmul.mubr.f32.gmra.mrb[0].mxu0 %v88
    %v242 = vpop.f32.mrb[0].mxu0
    %v243 = vadd.f32 %v159, %v242
    %v244 = vpop.f32.mrb[0].mxu0
    %v245 = vadd.f32 %v163, %v244
    %246 = vmatprep.mubr.f32.mxu0 0.0
    %247 = vmatmul.mubr.f32.gmra.mrb[0].mxu0 %v89
    %v248 = vpop.f32.mrb[0].mxu0
    %v249 = vadd.f32 %v159, %v248
    %v250 = vpop.f32.mrb[0].mxu0
    %v251 = vadd.f32 %v163, %v250
    %252 = vdwg.mxu0
    %253 = vmatprep.subr.mxu0 %v93
    %254 = vmatpush1.msra.mxu0 %v92
    %255 = vmatprep.subr.mxu0 %v97
    %256 = vmatpush1.msra.mxu0 %v96
    %257 = vmatprep.subr.mxu0 %v101
    %258 = vmatpush1.msra.mxu0 %v100
    %259 = vmatprep.subr.mxu0 %v105
    %260 = vmatpush1.msra.mxu0 %v104
    %261 = vmatprep.subr.mxu0 %v109
    %262 = vmatpush1.msra.mxu0 %v108
    %263 = vmatprep.subr.mxu0 %v113
    %264 = vmatpush1.msra.mxu0 %v112
    %265 = vmatprep.subr.mxu0 %v117
    %266 = vmatpush1.msra.mxu0 %v116
    %267 = vmatprep.subr.mxu0 %v121
    %268 = vmatpush1.msra.mxu0 %v120
    %269 = vmatprep.subr.mxu0 %v125
    %270 = vmatpush1.msra.mxu0 %v124
    %271 = vmatprep.subr.mxu0 %v129
    %272 = vmatpush1.msra.mxu0 %v128
    %273 = vmatprep.subr.mxu0 %v133
    %274 = vmatpush1.msra.mxu0 %v132
    %275 = vmatprep.subr.mxu0 %v137
    %276 = vmatpush1.msra.mxu0 %v136
    %277 = vmatprep.subr.mxu0 %v141
    %278 = vmatpush1.msra.mxu0 %v140
    %279 = vmatprep.subr.mxu0 %v145
    %280 = vmatpush1.msra.mxu0 %v144
    %281 = vmatprep.subr.mxu0 %v149
    %282 = vmatpush1.msra.mxu0 %v148
    %283 = vmatprep.subr.mxu0 %v153
    %284 = vmatpush1.msra.mxu0 %v152
    %285 = vmatprep.subr.mxu0 0.0
    %286 = vmatpush1.msra.mxu0 0.0
    %287 = vmatprep.subr.mxu0 0.0
    %288 = vmatpush1.msra.mxu0 0.0
    %289 = vmatprep.subr.mxu0 0.0
    %290 = vmatpush1.msra.mxu0 0.0
    %291 = vmatprep.subr.mxu0 0.0
    %292 = vmatpush1.msra.mxu0 0.0
    %293 = vmatprep.subr.mxu0 0.0
    %294 = vmatpush1.msra.mxu0 0.0
    %295 = vmatprep.subr.mxu0 0.0
    %296 = vmatpush1.msra.mxu0 0.0
    %297 = vmatprep.subr.mxu0 0.0
    %298 = vmatpush1.msra.mxu0 0.0
    %299 = vmatprep.subr.mxu0 0.0
    %300 = vmatpush1.msra.mxu0 0.0
    %301 = vmatprep.subr.mxu0 0.0
    %302 = vmatpush1.msra.mxu0 0.0
    %303 = vmatprep.subr.mxu0 0.0
    %304 = vmatpush1.msra.mxu0 0.0
    %305 = vmatprep.subr.mxu0 0.0
    %306 = vmatpush1.msra.mxu0 0.0
    %307 = vmatprep.subr.mxu0 0.0
    %308 = vmatpush1.msra.mxu0 0.0
    %309 = vmatprep.subr.mxu0 0.0
    %310 = vmatpush1.msra.mxu0 0.0
    %311 = vmatprep.subr.mxu0 0.0
    %312 = vmatpush1.msra.mxu0 0.0
    %313 = vmatprep.subr.mxu0 0.0
    %314 = vmatpush1.msra.mxu0 0.0
    %315 = vmatprep.subr.mxu0 0.0
    %316 = vmatpush1.msra.mxu0 0.0
    %317 = vmatprep.mubr.f32.mxu0 0.0
    %318 = vmatmul.mubr.f32.gmra.mrb[0].mxu0 %v88
    %v319 = vpop.f32.mrb[0].mxu0
    %v320 = vadd.f32 %v167, %v319
    %v321 = vpop.f32.mrb[0].mxu0
    %v322 = vadd.f32 %v171, %v321
    %323 = vmatprep.mubr.f32.mxu0 0.0
    %324 = vmatmul.mubr.f32.gmra.mrb[0].mxu0 %v89
    %v325 = vpop.f32.mrb[0].mxu0
    %v326 = vadd.f32 %v167, %v325
    %v327 = vpop.f32.mrb[0].mxu0
    %v328 = vadd.f32 %v171, %v327
    %329 = vdwg.mxu0
    %v330 = vmax.f32 %v243, 0.0
    %v331 = vmax.f32 %v245, 0.0
    %v332 = vmax.f32 %v320, 0.0
    %v333 = vmax.f32 %v322, 0.0
    %v334 = vmax.f32 %v249, 0.0
    %v335 = vmax.f32 %v251, 0.0
    %v336 = vmax.f32 %v326, 0.0
    %v337 = vmax.f32 %v328, 0.0
    %338 = vst [vmem:[#allocation11] sm:$0xff] %v330
    %339 = vst [vmem:[#allocation11 + $0x8] sm:$0xff] %v331
    %340 = vst [vmem:[#allocation11 + $0x10] sm:$0xff] %v332
    %341 = vst [vmem:[#allocation11 + $0x18] sm:$0xff] %v333
    %342 = vst [vmem:[#allocation11 + $0x20] sm:$0xff] %v334
    %343 = vst [vmem:[#allocation11 + $0x28] sm:$0xff] %v335
    %344 = vst [vmem:[#allocation11 + $0x30] sm:$0xff] %v336
    %345 = vst [vmem:[#allocation11 + $0x38] sm:$0xff] %v337
    %v346 = vld [vmem:[#allocation9] sm:$0xff]
    %v347 = vld [vmem:[#allocation9 + $0x8] sm:$0xff]
    %v348 = vld [vmem:[#allocation9 + $0x10] sm:$0xff]
    %v349 = vld [vmem:[#allocation9 + $0x18] sm:$0xff]
    %v350 = vld [vmem:[#allocation9 + $0x20] sm:$0xff]
    %v351 = vld [vmem:[#allocation9 + $0x28] sm:$0xff]
    %v352 = vld [vmem:[#allocation9 + $0x30] sm:$0xff]
    %v353 = vld [vmem:[#allocation9 + $0x38] sm:$0xff]
    %v354 = vld [vmem:[#allocation9 + $0x40] sm:$0xff]
    %v355 = vld [vmem:[#allocation9 + $0x48] sm:$0xff]
    %v356 = vld [vmem:[#allocation9 + $0x50] sm:$0xff]
    %v357 = vld [vmem:[#allocation9 + $0x58] sm:$0xff]
    %v358 = vld [vmem:[#allocation9 + $0x60] sm:$0xff]
    %v359 = vld [vmem:[#allocation9 + $0x68] sm:$0xff]
    %v360 = vld [vmem:[#allocation9 + $0x70] sm:$0xff]
    %v361 = vld [vmem:[#allocation9 + $0x78] sm:$0xff]
    %v362 = vld [vmem:[#allocation9 + $0x80] sm:$0xff]
    %v363 = vld [vmem:[#allocation9 + $0x88] sm:$0xff]
    %v364 = vld [vmem:[#allocation9 + $0x90] sm:$0xff]
    %v365 = vld [vmem:[#allocation9 + $0x98] sm:$0xff]
    %v366 = vld [vmem:[#allocation9 + $0xa0] sm:$0xff]
    %v367 = vld [vmem:[#allocation9 + $0xa8] sm:$0xff]
    %v368 = vld [vmem:[#allocation9 + $0xb0] sm:$0xff]
    %v369 = vld [vmem:[#allocation9 + $0xb8] sm:$0xff]
    %v370 = vld [vmem:[#allocation9 + $0xc0] sm:$0xff]
    %v371 = vld [vmem:[#allocation9 + $0xc8] sm:$0xff]
    %v372 = vld [vmem:[#allocation9 + $0xd0] sm:$0xff]
    %v373 = vld [vmem:[#allocation9 + $0xd8] sm:$0xff]
    %v374 = vld [vmem:[#allocation9 + $0xe0] sm:$0xff]
    %v375 = vld [vmem:[#allocation9 + $0xe8] sm:$0xff]
    %v376 = vld [vmem:[#allocation9 + $0xf0] sm:$0xff]
    %v377 = vld [vmem:[#allocation9 + $0xf8] sm:$0xff]
    %v378 = vld [vmem:[#allocation9 + $0x100] sm:$0xff]
    %v379 = vld [vmem:[#allocation9 + $0x108] sm:$0xff]
    %v380 = vld [vmem:[#allocation9 + $0x110] sm:$0xff]
    %v381 = vld [vmem:[#allocation9 + $0x118] sm:$0xff]
    %v382 = vld [vmem:[#allocation9 + $0x120] sm:$0xff]
    %v383 = vld [vmem:[#allocation9 + $0x128] sm:$0xff]
    %v384 = vld [vmem:[#allocation9 + $0x130] sm:$0xff]
    %v385 = vld [vmem:[#allocation9 + $0x138] sm:$0xff]
    %v386 = vld [vmem:[#allocation9 + $0x140] sm:$0xff]
    %v387 = vld [vmem:[#allocation9 + $0x148] sm:$0xff]
    %v388 = vld [vmem:[#allocation9 + $0x150] sm:$0xff]
    %v389 = vld [vmem:[#allocation9 + $0x158] sm:$0xff]
    %v390 = vld [vmem:[#allocation9 + $0x160] sm:$0xff]
    %v391 = vld [vmem:[#allocation9 + $0x168] sm:$0xff]
    %v392 = vld [vmem:[#allocation9 + $0x170] sm:$0xff]
    %v393 = vld [vmem:[#allocation9 + $0x178] sm:$0xff]
    %v394 = vld [vmem:[#allocation9 + $0x180] sm:$0xff]
    %v395 = vld [vmem:[#allocation9 + $0x188] sm:$0xff]
    %v396 = vld [vmem:[#allocation9 + $0x190] sm:$0xff]
    %v397 = vld [vmem:[#allocation9 + $0x198] sm:$0xff]
    %v398 = vld [vmem:[#allocation9 + $0x1a0] sm:$0xff]
    %v399 = vld [vmem:[#allocation9 + $0x1a8] sm:$0xff]
    %v400 = vld [vmem:[#allocation9 + $0x1b0] sm:$0xff]
    %v401 = vld [vmem:[#allocation9 + $0x1b8] sm:$0xff]
    %v402 = vld [vmem:[#allocation9 + $0x1c0] sm:$0xff]
    %v403 = vld [vmem:[#allocation9 + $0x1c8] sm:$0xff]
    %v404 = vld [vmem:[#allocation9 + $0x1d0] sm:$0xff]
    %v405 = vld [vmem:[#allocation9 + $0x1d8] sm:$0xff]
    %v406 = vld [vmem:[#allocation9 + $0x1e0] sm:$0xff]
    %v407 = vld [vmem:[#allocation9 + $0x1e8] sm:$0xff]
    %v408 = vld [vmem:[#allocation9 + $0x1f0] sm:$0xff]
    %v409 = vld [vmem:[#allocation9 + $0x1f8] sm:$0xff]
    %410 = vmatprep.subr.mxu0 0.0
    %411 = vmatpush1.msra.mxu0 %v346
    %412 = vmatprep.subr.mxu0 0.0
    %413 = vmatpush1.msra.mxu0 %v347
    %414 = vmatprep.subr.mxu0 0.0
    %415 = vmatpush1.msra.mxu0 %v348
    %416 = vmatprep.subr.mxu0 0.0
    %417 = vmatpush1.msra.mxu0 %v349
    %418 = vmatprep.subr.mxu0 0.0
    %419 = vmatpush1.msra.mxu0 %v350
    %420 = vmatprep.subr.mxu0 0.0
    %421 = vmatpush1.msra.mxu0 %v351
    %422 = vmatprep.subr.mxu0 0.0
    %423 = vmatpush1.msra.mxu0 %v352
    %424 = vmatprep.subr.mxu0 0.0
    %425 = vmatpush1.msra.mxu0 %v353
    %426 = vmatprep.subr.mxu0 0.0
    %427 = vmatpush1.msra.mxu0 %v354
    %428 = vmatprep.subr.mxu0 0.0
    %429 = vmatpush1.msra.mxu0 %v355
    %430 = vmatprep.subr.mxu0 0.0
    %431 = vmatpush1.msra.mxu0 %v356
    %432 = vmatprep.subr.mxu0 0.0
    %433 = vmatpush1.msra.mxu0 %v357
    %434 = vmatprep.subr.mxu0 0.0
    %435 = vmatpush1.msra.mxu0 %v358
    %436 = vmatprep.subr.mxu0 0.0
    %437 = vmatpush1.msra.mxu0 %v359
    %438 = vmatprep.subr.mxu0 0.0
    %439 = vmatpush1.msra.mxu0 %v360
    %440 = vmatprep.subr.mxu0 0.0
    %441 = vmatpush1.msra.mxu0 %v361
    %442 = vmatprep.subr.mxu0 0.0
    %443 = vmatpush1.msra.mxu0 %v362
    %444 = vmatprep.subr.mxu0 0.0
    %445 = vmatpush1.msra.mxu0 %v363
    %446 = vmatprep.subr.mxu0 0.0
    %447 = vmatpush1.msra.mxu0 %v364
    %448 = vmatprep.subr.mxu0 0.0
    %449 = vmatpush1.msra.mxu0 %v365
    %450 = vmatprep.subr.mxu0 0.0
    %451 = vmatpush1.msra.mxu0 %v366
    %452 = vmatprep.subr.mxu0 0.0
    %453 = vmatpush1.msra.mxu0 %v367
    %454 = vmatprep.subr.mxu0 0.0
    %455 = vmatpush1.msra.mxu0 %v368
    %456 = vmatprep.subr.mxu0 0.0
    %457 = vmatpush1.msra.mxu0 %v369
    %458 = vmatprep.subr.mxu0 0.0
    %459 = vmatpush1.msra.mxu0 %v370
    %460 = vmatprep.subr.mxu0 0.0
    %461 = vmatpush1.msra.mxu0 %v371
    %462 = vmatprep.subr.mxu0 0.0
    %463 = vmatpush1.msra.mxu0 %v372
    %464 = vmatprep.subr.mxu0 0.0
    %465 = vmatpush1.msra.mxu0 %v373
    %466 = vmatprep.subr.mxu0 0.0
    %467 = vmatpush1.msra.mxu0 %v374
    %468 = vmatprep.subr.mxu0 0.0
    %469 = vmatpush1.msra.mxu0 %v375
    %470 = vmatprep.subr.mxu0 0.0
    %471 = vmatpush1.msra.mxu0 %v376
    %472 = vmatprep.subr.mxu0 0.0
    %473 = vmatpush1.msra.mxu0 %v377
    %474 = vmatprep.mubr.f32.mxu0 %v331
    %475 = vmatmul.mubr.f32.gmra.mrb[0].mxu0 %v330
    %v476 = vpop.f32.mrb[0].mxu0
    %v477 = vadd.f32 0.0, %v476
    %v478 = vpop.f32.mrb[0].mxu0
    %479 = vmatprep.mubr.f32.mxu0 %v335
    %480 = vmatmul.mubr.f32.gmra.mrb[0].mxu0 %v334
    %v481 = vpop.f32.mrb[0].mxu0
    %v482 = vadd.f32 0.0, %v481
    %v483 = vpop.f32.mrb[0].mxu0
    %484 = vdwg.mxu0
    %485 = vmatprep.subr.mxu0 0.0
    %486 = vmatpush1.msra.mxu0 %v378
    %487 = vmatprep.subr.mxu0 0.0
    %488 = vmatpush1.msra.mxu0 %v379
    %489 = vmatprep.subr.mxu0 0.0
    %490 = vmatpush1.msra.mxu0 %v380
    %491 = vmatprep.subr.mxu0 0.0
    %492 = vmatpush1.msra.mxu0 %v381
    %493 = vmatprep.subr.mxu0 0.0
    %494 = vmatpush1.msra.mxu0 %v382
    %495 = vmatprep.subr.mxu0 0.0
    %496 = vmatpush1.msra.mxu0 %v383
    %497 = vmatprep.subr.mxu0 0.0
    %498 = vmatpush1.msra.mxu0 %v384
    %499 = vmatprep.subr.mxu0 0.0
    %500 = vmatpush1.msra.mxu0 %v385
    %501 = vmatprep.subr.mxu0 0.0
    %502 = vmatpush1.msra.mxu0 %v386
    %503 = vmatprep.subr.mxu0 0.0
    %504 = vmatpush1.msra.mxu0 %v387
    %505 = vmatprep.subr.mxu0 0.0
    %506 = vmatpush1.msra.mxu0 %v388
    %507 = vmatprep.subr.mxu0 0.0
    %508 = vmatpush1.msra.mxu0 %v389
    %509 = vmatprep.subr.mxu0 0.0
    %510 = vmatpush1.msra.mxu0 %v390
    %511 = vmatprep.subr.mxu0 0.0
    %512 = vmatpush1.msra.mxu0 %v391
    %513 = vmatprep.subr.mxu0 0.0
    %514 = vmatpush1.msra.mxu0 %v392
    %515 = vmatprep.subr.mxu0 0.0
    %516 = vmatpush1.msra.mxu0 %v393
    %517 = vmatprep.subr.mxu0 0.0
    %518 = vmatpush1.msra.mxu0 %v394
    %519 = vmatprep.subr.mxu0 0.0
    %520 = vmatpush1.msra.mxu0 %v395
    %521 = vmatprep.subr.mxu0 0.0
    %522 = vmatpush1.msra.mxu0 %v396
    %523 = vmatprep.subr.mxu0 0.0
    %524 = vmatpush1.msra.mxu0 %v397
    %525 = vmatprep.subr.mxu0 0.0
    %526 = vmatpush1.msra.mxu0 %v398
    %527 = vmatprep.subr.mxu0 0.0
    %528 = vmatpush1.msra.mxu0 %v399
    %529 = vmatprep.subr.mxu0 0.0
    %530 = vmatpush1.msra.mxu0 %v400
    %531 = vmatprep.subr.mxu0 0.0
    %532 = vmatpush1.msra.mxu0 %v401
    %533 = vmatprep.subr.mxu0 0.0
    %534 = vmatpush1.msra.mxu0 %v402
    %535 = vmatprep.subr.mxu0 0.0
    %536 = vmatpush1.msra.mxu0 %v403
    %537 = vmatprep.subr.mxu0 0.0
    %538 = vmatpush1.msra.mxu0 %v404
    %539 = vmatprep.subr.mxu0 0.0
    %540 = vmatpush1.msra.mxu0 %v405
    %541 = vmatprep.subr.mxu0 0.0
    %542 = vmatpush1.msra.mxu0 %v406
    %543 = vmatprep.subr.mxu0 0.0
    %544 = vmatpush1.msra.mxu0 %v407
    %545 = vmatprep.subr.mxu0 0.0
    %546 = vmatpush1.msra.mxu0 %v408
    %547 = vmatprep.subr.mxu0 0.0
    %548 = vmatpush1.msra.mxu0 %v409
    %549 = vmatprep.mubr.f32.mxu0 %v333
    %550 = vmatmul.mubr.f32.gmra.mrb[0].mxu0 %v332
    %v551 = vpop.f32.mrb[0].mxu0
    %v552 = vadd.f32 %v477, %v551
    %v553 = vpop.f32.mrb[0].mxu0
    %554 = vmatprep.mubr.f32.mxu0 %v337
    %555 = vmatmul.mubr.f32.gmra.mrb[0].mxu0 %v336
    %v556 = vpop.f32.mrb[0].mxu0
    %v557 = vadd.f32 %v482, %v556
    %v558 = vpop.f32.mrb[0].mxu0
    %559 = vdwg.mxu0
    %v560 = vld [vmem:[#allocation10] sm:$0xff]
    %v561 = vld [vmem:[#allocation10 + $0x8] sm:$0xff]
    %v562 = vadd.f32 %v560, %v552
    %v563 = vadd.f32 %v561, %v557
    %564 = vst [vmem:[#allocation10] sm:$0xff] %v562
    %565 = vst [vmem:[#allocation10 + $0x8] sm:$0xff] %v563
    %v566 = vld [vmem:[#allocation3] sm:$0xff]
    %v567 = vld [vmem:[#allocation3 + $0x8] sm:$0xff]
    %v568 = vadd.f32 %v330, %v331
    %v569 = vadd.f32 %v334, %v335
    %v570 = vadd.f32 %v568, %v332
    %v571 = vadd.f32 %v569, %v336
    %v572 = vadd.f32 %v570, %v333
    %v573 = vadd.f32 %v571, %v337
    %v574 = vadd.f32 %v566, %v572
    %v575 = vadd.f32 %v567, %v573
    %576 = vst [vmem:[#allocation3] sm:$0xff] %v574
    %577 = vst [vmem:[#allocation3 + $0x8] sm:$0xff] %v575
    // Predicated region
    $region38: #{sae_forward.1} parent=1 // pred_check
      %p578 = pneg %p68
    $region39: #{sae_forward.1} parent=1 // pred_check_branch
      %580 = sbr.rel (%p578) target = $region41
    $region40: #{sae_forward.1} parent=1 // pred_region
      %v581 = vld [vmem:[#allocation4] sm:$0xff]
      %v582 = vld [vmem:[#allocation4 + $0x8] sm:$0xff]
      %v583 = vld [vmem:[#allocation10] sm:$0xff]
      %v584 = vld [vmem:[#allocation10 + $0x8] sm:$0xff]
      %v586 = vlaneseq
      %v587 = vshrl.u32 %v586, 7
      %v588 = vsub.s32 0, %v587
      %v589 = vrot.slane %v67, %v588
      %v591 = vadd.f32 %v583, %v589
      %v592 = vadd.f32 %v584, %v589
      %593 = vst [vmem:[#allocation10] sm:$0xff] %v591
      %594 = vst [vmem:[#allocation10 + $0x8] sm:$0xff] %v592
      %v595 = vld [vmem:[#allocation10] sm:$0xff]
      %v596 = vld [vmem:[#allocation10 + $0x8] sm:$0xff]
      %v597 = vsub.f32 %v595, %v581
      %v598 = vsub.f32 %v596, %v582
      %v599 = vmul.f32 %v597, %v597
      %v600 = vmul.f32 %v598, %v598
      %601 = vst [vmem:[%s7] sm:$0xff] %v599
      %602 = vst [vmem:[%s7 + $0x8] sm:$0xff] %v600
      %v603 = vld [vmem:[#allocation3] sm:$0xff]
      %v604 = vld [vmem:[#allocation3 + $0x8] sm:$0xff]
      %605 = vst [vmem:[%s8] sm:$0xff] %v603
      %606 = vst [vmem:[%s8 + $0x8] sm:$0xff] %v604
    $region41: #{sae_forward.1} parent=1 // pred_fallthru
      _
    // Predicated region
    $region42: #{sae_forward.1} parent=1 // pred_check
      _
    $region43: #{sae_forward.1} parent=1 // pred_check_branch
      %608 = sbr.rel (0) target = $region45
    $region44: #{sae_forward.1} parent=1 // pred_region
      %s610 = ssub.s32 256, 256
      %611 = vsyncadd [#allocation6], %s610
      %s612 = sshll.u32 [#allocation10], 4
      %s613 = int_to_ptr.vmem [resolvable:$true] %s612
      %618 = dma.vmem_to_hbm [thread:$0]  %s613, 256, %s5, [#allocation6], 128, 128, 8
    $region45: #{sae_forward.1} parent=1 // pred_fallthru
      _
    // Predicated region
    $region46: #{sae_forward.1} parent=1 // pred_check
      _
    $region47: #{sae_forward.1} parent=1 // pred_check_branch
      %620 = sbr.rel (0) target = $region49
    $region48: #{sae_forward.1} parent=1 // pred_region
      %s622 = ssub.s32 1024, 1024
      %623 = vsyncadd [#allocation12], %s622
      %s624 = sshll.u32 [#allocation11], 4
      %s625 = int_to_ptr.vmem [resolvable:$true] %s624
      %630 = dma.vmem_to_hbm [thread:$0]  %s625, 1024, %s6, [#allocation12], 512, 512, 32
    $region49: #{sae_forward.1} parent=1 // pred_fallthru
      _
    // Predicated region
    $region50: #{sae_forward.1} parent=1 // pred_check
      _
    $region51: #{sae_forward.1} parent=1 // pred_check_branch
      %632 = sbr.rel (0) target = $region53
    $region52: #{sae_forward.1} parent=1 // pred_region
      _
    $region53: #{sae_forward.1} parent=1 // pred_fallthru
      _
    // Predicated region
    $region54: #{sae_forward.1} parent=1 // pred_check
      _
    $region55: #{sae_forward.1} parent=1 // pred_check_branch
      %634 = sbr.rel (0) target = $region57
    $region56: #{sae_forward.1} parent=1 // pred_region
      _
    $region57: #{sae_forward.1} parent=1 // pred_fallthru
      _
    // Predicated region
    $region58: #{sae_forward.1} parent=1 // pred_check
      _
    $region59: #{sae_forward.1} parent=1 // pred_check_branch
      %636 = sbr.rel (0) target = $region61
    $region60: #{sae_forward.1} parent=1 // pred_region
      %637 = dma.done [#allocation6], 256
    $region61: #{sae_forward.1} parent=1 // pred_fallthru
      _
    // Predicated region
    $region62: #{sae_forward.1} parent=1 // pred_check
      _
    $region63: #{sae_forward.1} parent=1 // pred_check_branch
      %639 = sbr.rel (0) target = $region65
    $region64: #{sae_forward.1} parent=1 // pred_region
      %640 = dma.done [#allocation12], 1024
    $region65: #{sae_forward.1} parent=1 // pred_fallthru
      _
    // Predicated region
    $region66: #{sae_forward.1} parent=1 // pred_check
      _
    $region67: #{sae_forward.1} parent=1 // pred_check_branch
      %642 = sbr.rel (0) target = $region69
    $region68: #{sae_forward.1} parent=1 // pred_region
      _
    $region69: #{sae_forward.1} parent=1 // pred_fallthru
      _
    // Predicated region
    $region70: #{sae_forward.1} parent=1 // pred_check
      _
    $region71: #{sae_forward.1} parent=1 // pred_check_branch
      %644 = sbr.rel (0) target = $region73
    $region72: #{sae_forward.1} parent=1 // pred_region
      _
    $region73: #{sae_forward.1} parent=1 // pred_fallthru
      _
    %645 = vsyncpa [#allocation5], 1
    %646 = vsyncpa [#allocation8], 1
    %647 = vsyncpa [#allocation6], 1
    %648 = vsyncpa [#allocation12], 1

</llo_original>
